<compile_context>
chip_gen: v5e
topology: v5e:2x2
jax: 0.10.0
libtpu: 0.0.40
codegen_flags: <defaults>
</compile_context>

<pallas_src>
import functools

import jax
import jax.numpy as jnp
from jax.experimental import pallas as pl
from jax.experimental.pallas import tpu as pltpu


def _gap1d_kernel(x_ref, o_ref, acc_ref, *, inv_len):
    k = pl.program_id(2)  # reduction step over the length axis

    @pl.when(k == 0)
    def _init():
        acc_ref[...] = jnp.zeros_like(acc_ref)

    # x_ref: (Nb, Ct, Lt) in the input dtype; accumulate partial sums in f32.
    acc_ref[...] += jnp.sum(x_ref[...].astype(jnp.float32), axis=-1)

    @pl.when(k == pl.num_programs(2) - 1)
    def _finalize():
        o_ref[...] = (acc_ref[...] * inv_len).astype(o_ref.dtype)


def _largest_aligned_divisor(dim, align, cap):
    """Largest divisor of `dim` that is a multiple of `align` and <= cap.

    Returns None if `dim` is not a multiple of `align` (unaligned fallback:
    caller uses the full dim, which is always a legal block extent).
    """
    if dim % align != 0:
        return None
    cap = max(align, min(cap, dim))
    best = align
    for cand in range(align, cap + 1, align):
        if dim % cand == 0:
            best = cand
    return best


def _choose_tiles(N, C, L, itemsize, target_block_bytes):
    # Batch tile: sublane dim of the output block -- want >= 8 when possible.
    nb = _largest_aligned_divisor(N, 8, 8)
    Nb = nb if nb is not None else N
    # Channel tile: lane dim of the output / sublane dim of the input block.
    ct = _largest_aligned_divisor(C, 128, 512)
    Ct = ct if ct is not None else C
    # Length tile: reduction axis; size so one input block is ~target bytes.
    lt_cap = max(128, target_block_bytes // max(1, Nb * Ct * itemsize))
    lt = _largest_aligned_divisor(L, 128, lt_cap)
    Lt = lt if lt is not None else L
    return Nb, Ct, Lt


def gap1d(x, *, target_block_bytes=2 * 1024 * 1024):
    """Global average pool over the last axis + flatten: (N, C, L) -> (N, C)."""
    N, C, L = x.shape
    itemsize = jnp.dtype(x.dtype).itemsize
    Nb, Ct, Lt = _choose_tiles(N, C, L, itemsize, target_block_bytes)
    grid = (N // Nb, C // Ct, L // Lt)

    # VMEM budget: 2 double-buffered input blocks + 2 output blocks + scratch,
    # with headroom.  Never below the default scoped limit, never absurd.
    block_in_bytes = Nb * Ct * Lt * itemsize
    block_out_bytes = Nb * Ct * itemsize
    scratch_bytes = Nb * Ct * 4
    vmem_needed = 2 * block_in_bytes + 2 * block_out_bytes + scratch_bytes
    vmem_limit = int(min(96 * 1024 * 1024,
                         max(vmem_needed + 2 * 1024 * 1024, 16 * 1024 * 1024)))

    cost = pl.CostEstimate(
        flops=N * C * L,
        transcendentals=0,
        bytes_accessed=N * C * L * itemsize + N * C * itemsize,
    )

    kernel = functools.partial(_gap1d_kernel, inv_len=1.0 / L)

    return pl.pallas_call(
        kernel,
        out_shape=jax.ShapeDtypeStruct((N, C), x.dtype),
        grid_spec=pltpu.PrefetchScalarGridSpec(
            num_scalar_prefetch=0,
            grid=grid,
            in_specs=[pl.BlockSpec((Nb, Ct, Lt), lambda n, c, k: (n, c, k))],
            out_specs=pl.BlockSpec((Nb, Ct), lambda n, c, k: (n, c)),
            scratch_shapes=[pltpu.VMEM((Nb, Ct), jnp.float32)],
        ),
        compiler_params=pltpu.CompilerParams(
            dimension_semantics=("parallel", "parallel", "arbitrary"),
            vmem_limit_bytes=vmem_limit,
        ),
        cost_estimate=cost,
    )(x)


if __name__ == "__main__":
    key = jax.random.PRNGKey(0)

    # Small shape consistent with the module: (batch, channels, length).
    N, C, L = 2, 4, 16
    x = jax.random.normal(key, (N, C, L), dtype=jnp.float32)

    out = gap1d(x)
    jax.block_until_ready(out)

    # Reference: mean over last axis (== AdaptiveAvgPool1d(1) + Flatten).
    ref = jnp.mean(x, axis=-1)
    assert out.shape == (N, C), out.shape
    assert jnp.allclose(out, ref, atol=1e-5, rtol=1e-5), "mismatch vs reference"

    # Also exercise the aligned, tiled path (8-div batch, 128-div C/L, bf16 DMA).
    x2 = jax.random.normal(jax.random.PRNGKey(1), (16, 256, 512),
                           dtype=jnp.bfloat16)
    out2 = gap1d(x2)
    jax.block_until_ready(out2)
    ref2 = jnp.mean(x2.astype(jnp.float32), axis=-1)
    assert out2.shape == (16, 256), out2.shape
    assert jnp.allclose(out2.astype(jnp.float32), ref2, atol=2e-2, rtol=2e-2), \
        "mismatch vs reference (tiled)"

    print("KERNEL_OK")
</pallas_src>

<mosaic_0001>
module attributes {stable_mosaic.version = 11 : i64} {
  func.func @_gap1d_kernel(%arg0: i32, %arg1: i32, %arg2: i32, %arg3: memref<2x4x16xf32, #tpu.memory_space<vmem>>, %arg4: memref<2x4xf32, #tpu.memory_space<vmem>>, %arg5: memref<2x4xf32, #tpu.memory_space<vmem>>) attributes {dimension_semantics = [#tpu.dimension_semantics<parallel>, #tpu.dimension_semantics<parallel>, #tpu.dimension_semantics<arbitrary>], iteration_bounds = array<i64: 1, 1, 1>, scalar_prefetch = 0 : i64, scratch_operands = 1 : i64, tpu.core_type = #tpu.core_type<tc>, window_params = [{transform_indices = @transform_0, window_bounds = array<i64: 2, 4, 16>}, {transform_indices = @transform_1, window_bounds = array<i64: 2, 4>}]} {
    %c0_i32 = arith.constant 0 : i32
    %0 = arith.cmpi eq, %arg2, %c0_i32 : i32
    %1 = arith.extui %0 : i1 to i32
    %c0_i32_0 = arith.constant 0 : i32
    %2 = arith.cmpi ne, %1, %c0_i32_0 : i32
    scf.if %2 {
      %cst_9 = arith.constant 0.000000e+00 : f32
      %11 = vector.broadcast %cst_9 : f32 to vector<2x4xf32>
      %c0_10 = arith.constant 0 : index
      %c0_11 = arith.constant 0 : index
      %12 = vector.load %arg5[%c0_10, %c0_11] : memref<2x4xf32, #tpu.memory_space<vmem>>, vector<2x4xf32>
      tpu.vector_store %arg5[%c0_10, %c0_11], %11 {strides = array<i32>} : memref<2x4xf32, #tpu.memory_space<vmem>>, vector<2x4xf32>,
    } else {
    }
    %c0 = arith.constant 0 : index
    %c0_1 = arith.constant 0 : index
    %3 = vector.load %arg5[%c0, %c0_1] : memref<2x4xf32, #tpu.memory_space<vmem>>, vector<2x4xf32>
    %c0_2 = arith.constant 0 : index
    %c0_3 = arith.constant 0 : index
    %c0_4 = arith.constant 0 : index
    %4 = vector.load %arg3[%c0_2, %c0_3, %c0_4] : memref<2x4x16xf32, #tpu.memory_space<vmem>>, vector<2x4x16xf32>
    %cst = arith.constant dense<0.000000e+00> : vector<2x4xf32>
    %5 = vector.multi_reduction <add>, %4, %cst [2] : vector<2x4x16xf32> to vector<2x4xf32>
    %6 = arith.addf %3, %5 : vector<2x4xf32>
    %c0_5 = arith.constant 0 : index
    %c0_6 = arith.constant 0 : index
    %7 = vector.load %arg5[%c0_5, %c0_6] : memref<2x4xf32, #tpu.memory_space<vmem>>, vector<2x4xf32>
    tpu.vector_store %arg5[%c0_5, %c0_6], %6 {strides = array<i32>} : memref<2x4xf32, #tpu.memory_space<vmem>>, vector<2x4xf32>,
    %c0_i32_7 = arith.constant 0 : i32
    %8 = arith.cmpi eq, %arg2, %c0_i32_7 : i32
    %9 = arith.extui %8 : i1 to i32
    %c0_i32_8 = arith.constant 0 : i32
    %10 = arith.cmpi ne, %9, %c0_i32_8 : i32
    scf.if %10 {
      %c0_9 = arith.constant 0 : index
      %c0_10 = arith.constant 0 : index
      %11 = vector.load %arg5[%c0_9, %c0_10] : memref<2x4xf32, #tpu.memory_space<vmem>>, vector<2x4xf32>
      %cst_11 = arith.constant 6.250000e-02 : f32
      %12 = vector.broadcast %cst_11 : f32 to vector<2x4xf32>
      %13 = arith.mulf %11, %12 : vector<2x4xf32>
      %c0_12 = arith.constant 0 : index
      %c0_13 = arith.constant 0 : index
      %14 = vector.load %arg4[%c0_12, %c0_13] : memref<2x4xf32, #tpu.memory_space<vmem>>, vector<2x4xf32>
      tpu.vector_store %arg4[%c0_12, %c0_13], %13 {strides = array<i32>} : memref<2x4xf32, #tpu.memory_space<vmem>>, vector<2x4xf32>,
    } else {
    }
    return
  }
  func.func @transform_0(%arg0: i32, %arg1: i32, %arg2: i32) -> (i32, i32, i32) {
    %c0_i32 = arith.constant 0 : i32
    return %arg0, %arg1, %arg2 : i32, i32, i32
  }
  func.func @transform_1(%arg0: i32, %arg1: i32, %arg2: i32) -> (i32, i32) {
    %c0_i32 = arith.constant 0 : i32
    return %arg0, %arg1 : i32, i32
  }
}

</mosaic_0001>

<llo_original>
// kernel: tpu_custom_call.1
$region0: #{tpu_custom_call.1}
  #allocation0 [shape = 'u32[]', space=smem, size = 0x4, offset = 0x4, fixed_abs, tag = 'smem constant byte address 0x4 - core index']
  #allocation1 [shape = 'u32[72,128]{1,0:T(1,128)}', space=vmem, size = 0x9000, scoped, tag = 'internal scratch']
  #allocation2 [shape = 'f32[2,4]{1,0:T(2,128)}', space=vmem, size = 0x400, scoped, tag = 'scratch operand']
  %s0 = inlined_call_operand.hbm [shape: f32[2,4,16], index: 0, kind: input, shape index: {}]
  %s1 = inlined_call_operand.hbm [shape: f32[2,4], index: 1, kind: output, shape index: {}]
  %s2 = sld [smem:[#allocation0]]
  $region26: #{tpu_custom_call.1} parent=0
    _
  %s4 = ssub.s32 1, %s2
  %s5 = scalar_select 0, %s4, %s2
  $region1: #{tpu_custom_call.1} parent=0
    #allocation3 [shape = 'u8[4096]{0}', space=vmem, size = 0x1000, scoped, tag = 'input window, operand 0, single buffered']
    #allocation4 [shape = 's32[1]{0}', space=sflag, size = 0x4, scoped, tag = 'scoped memory for tpu_custom_call.1']
    #allocation5 [shape = 's32[1]{0}', space=sflag, size = 0x4, scoped, tag = 'scoped memory for tpu_custom_call.1']
    #allocation6 [shape = 'u8[1024]{0}', space=vmem, size = 0x400, scoped, tag = 'output window, operand 0, single buffered']
    %6 = vsyncpa [#allocation4], 0
    %7 = vsyncpa [#allocation5], 0
    // Predicated region
    $region2: #{tpu_custom_call.1} parent=1 // pred_check
      _
    $region3: #{tpu_custom_call.1} parent=1 // pred_check_branch
      %9 = sbr.rel (0) target = $region5
    $region4: #{tpu_custom_call.1} parent=1 // pred_region
      %11 = vsyncadd [#allocation4], 0
      %s12 = sshll.u32 %s0, 4
      %s13 = int_to_ptr.hbm [resolvable:$true] %s12
      %s14 = sshll.u32 [#allocation3], 4
      %s15 = int_to_ptr.vmem [resolvable:$true] %s14
      %20 = dma.hbm_to_vmem [thread:$0]  %s13, 128, %s15, [#allocation4], 64, 64, 4
    $region5: #{tpu_custom_call.1} parent=1 // pred_fallthru
      _
    // Predicated region
    $region6: #{tpu_custom_call.1} parent=1 // pred_check
      _
    $region7: #{tpu_custom_call.1} parent=1 // pred_check_branch
      %22 = sbr.rel (0) target = $region9
    $region8: #{tpu_custom_call.1} parent=1 // pred_region
      %24 = dma.done [#allocation4], 128
    $region9: #{tpu_custom_call.1} parent=1 // pred_fallthru
      _
    %p25 = scmp.eq.s32.totalorder 0, 0
    // Predicated region
    $region10: #{tpu_custom_call.1} parent=1 // pred_check
      %p26 = pneg %p25
    $region11: #{tpu_custom_call.1} parent=1 // pred_check_branch
      %28 = sbr.rel (%p26) target = $region13
    $region12: #{tpu_custom_call.1} parent=1 // pred_region
      %vm29 = vcmask 25600
      %30 = vst.msk [vmem:[#allocation2] sm:$0x3] %vm29, 0.0
    $region13: #{tpu_custom_call.1} parent=1 // pred_fallthru
      _
    %v31 = vld [vmem:[#allocation2] sm:$0x3]
    %v32 = vld [vmem:[#allocation3] sm:$0xf]
    %v33 = vld [vmem:[#allocation3 + $0x4] sm:$0xf]
    %vm34 = vcmask 125952
    %v35 = vsel %vm34, %v32, 0.0
    %36 = vadd.xlane.f32.xlu0 %v35
    %v37 = vpop.xlane.xlu0 %36
    %v38 = vsel %vm34, %v33, 0.0
    %39 = vadd.xlane.f32.xlu0 %v38
    %v40 = vpop.xlane.xlu0 %39
    %v43 = vlaneseq
    %v44 = vand.u32 %v43, 127
    %v45 = vperm.slane %v37, %v44
    %v46 = vperm.slane %v40, %v44
    %vm47 = vcmask 1041409
    %v48 = vsel %vm47, %v46, %v45
    %v50 = vadd.f32 %v31, %v48
    %vm51 = vcmask 25600
    %52 = vst.msk [vmem:[#allocation2] sm:$0x3] %vm51, %v50
    // Predicated region
    $region14: #{tpu_custom_call.1} parent=1 // pred_check
      %p53 = pneg %p25
    $region15: #{tpu_custom_call.1} parent=1 // pred_check_branch
      %55 = sbr.rel (%p53) target = $region17
    $region16: #{tpu_custom_call.1} parent=1 // pred_region
      %v56 = vld [vmem:[#allocation2] sm:$0x3]
      %v57 = vmul.f32 %v56, 0.0625
      %58 = vst.msk [vmem:[#allocation6] sm:$0x3] %vm51, %v57
    $region17: #{tpu_custom_call.1} parent=1 // pred_fallthru
      _
    // Predicated region
    $region18: #{tpu_custom_call.1} parent=1 // pred_check
      _
    $region19: #{tpu_custom_call.1} parent=1 // pred_check_branch
      %60 = sbr.rel (0) target = $region21
    $region20: #{tpu_custom_call.1} parent=1 // pred_region
      %62 = vsyncadd [#allocation5], 0
      %s64 = sshll.u32 [#allocation6], 4
      %s65 = int_to_ptr.vmem [resolvable:$true] %s64
      %s66 = sshll.u32 %s1, 4
      %s67 = int_to_ptr.hbm [resolvable:$true] %s66
      %69 = dma.vmem_to_hbm [thread:$0]  %s65, 32, %s67, [#allocation5]
    $region21: #{tpu_custom_call.1} parent=1 // pred_fallthru
      _
    // Predicated region
    $region22: #{tpu_custom_call.1} parent=1 // pred_check
      _
    $region23: #{tpu_custom_call.1} parent=1 // pred_check_branch
      %71 = sbr.rel (0) target = $region25
    $region24: #{tpu_custom_call.1} parent=1 // pred_region
      %73 = dma.done [#allocation5], 32
    $region25: #{tpu_custom_call.1} parent=1 // pred_fallthru
      _
    %74 = vsyncpa [#allocation4], 1
    %75 = vsyncpa [#allocation5], 1

</llo_original>
